<compile_context>
chip_gen: v7x
topology: tpu7x:2x2x1
jax: 0.10.0
libtpu: 0.0.40
codegen_flags: <defaults>
</compile_context>

<pallas_src>
import jax
import jax.numpy as jnp
from jax.experimental import pallas as pl
from jax.experimental.pallas import tpu as pltpu


def _make_focal_kernel(alpha: float, gamma: float):
    alpha = float(alpha)
    gamma = float(gamma)

    def kernel(pred_ref, tgt_ref, mask_ref, sum_ref, cnt_ref):
        # Grid axis 1 is the (per-core) reduction over row tiles.
        @pl.when(pl.program_id(1) == 0)
        def _():
            sum_ref[...] = jnp.zeros_like(sum_ref)
            cnt_ref[...] = jnp.zeros_like(cnt_ref)

        conf = pred_ref[...].astype(jnp.float32)
        conf = jnp.clip(conf, 1e-6, 1.0 - 1e-6)

        # pos = (conf_gt == 1) & mask   (padded tail has mask == 0)
        pos = jnp.logical_and(tgt_ref[...].astype(jnp.float32) == 1.0,
                              mask_ref[...] != 0)

        one_minus = 1.0 - conf
        if gamma == 2.0:               # usual focal setting: no exp/log needed
            pow_term = one_minus * one_minus
        elif gamma == 1.0:
            pow_term = one_minus
        elif gamma == 0.0:
            pow_term = jnp.ones_like(one_minus)
        else:                          # general gamma: base is clipped > 0
            pow_term = jnp.exp(gamma * jnp.log(one_minus))

        loss = (-alpha) * pow_term * jnp.log(conf)

        # Elementwise (VPU-only) accumulation into the resident output block;
        # the cross-lane reduction is deferred to the JAX glue.
        sum_ref[...] += jnp.where(pos, loss, 0.0)
        cnt_ref[...] += pos.astype(jnp.float32)

    return kernel


def id_loss(pred, target, mask, alpha, gamma, pos_weight, neg_weight,
            *, lanes=512, max_block_rows=256, num_cores=2):
    """Matches IDLoss.forward: pos_weight * mean(-alpha*(1-p)^gamma*log(p))
    over elements where (target == 1) & mask.  neg_weight is unused, exactly
    as in the reference.  Returns f32 scalar (NaN if there are no positives,
    same as the reference)."""
    total = pred.size

    # Flatten to 1D in native dtypes (free reshape, no extra cast passes).
    pred_flat = pred.reshape(-1)
    tgt_flat = target.reshape(-1)
    mask_flat = mask.reshape(-1)
    if mask_flat.dtype == jnp.bool_:
        # Same HBM bytes as bool; avoids i1-in-VMEM lowering corner cases.
        mask_flat = mask_flat.astype(jnp.int8)

    # Lane-dense 2D tiling: `lanes` is a multiple of 128; rows are padded so
    # they split evenly into num_cores * block_rows * r_per_core.
    rows_needed = -(-total // lanes)
    block_rows = max(8, min(max_block_rows, ((rows_needed + 7) // 8) * 8))
    r_per_core = -(-rows_needed // (num_cores * block_rows))
    rows_padded = num_cores * r_per_core * block_rows
    pad = rows_padded * lanes - total
    if pad:
        # Padded tail has mask == 0, so it contributes nothing; pred pad value
        # 0.5 keeps log() finite.
        pred_flat = jnp.concatenate(
            [pred_flat, jnp.full((pad,), 0.5, dtype=pred_flat.dtype)])
        tgt_flat = jnp.concatenate(
            [tgt_flat, jnp.zeros((pad,), dtype=tgt_flat.dtype)])
        mask_flat = jnp.concatenate(
            [mask_flat, jnp.zeros((pad,), dtype=mask_flat.dtype)])

    pred2d = pred_flat.reshape(rows_padded, lanes)
    tgt2d = tgt_flat.reshape(rows_padded, lanes)
    mask2d = mask_flat.reshape(rows_padded, lanes)

    # Each core c handles row-block range [c*r_per_core, (c+1)*r_per_core).
    def in_spec():
        return pl.BlockSpec((block_rows, lanes),
                            lambda c, r: (c * r_per_core + r, 0))

    out_spec = pl.BlockSpec((block_rows, lanes), lambda c, r: (c, 0))
    out_shape = jax.ShapeDtypeStruct((num_cores * block_rows, lanes),
                                     jnp.float32)

    loss_sum, pos_cnt = pl.pallas_call(
        _make_focal_kernel(alpha, gamma),
        out_shape=(out_shape, out_shape),
        grid=(num_cores, r_per_core),
        in_specs=[in_spec(), in_spec(), in_spec()],
        out_specs=(out_spec, out_spec),
        compiler_params=pltpu.CompilerParams(
            dimension_semantics=("parallel", "arbitrary"),
            vmem_limit_bytes=32 * 1024 * 1024),
    )(pred2d, tgt2d, mask2d)

    # Tiny finalization (glue, off the hot path): cross-lane reduce + mean.
    total_sum = jnp.sum(loss_sum)
    total_cnt = jnp.sum(pos_cnt)
    # NOTE: total_cnt == 0 yields NaN, matching the reference .mean() of an
    # empty selection.
    return jnp.float32(pos_weight) * total_sum / total_cnt


def _reference(pred, target, mask, alpha, gamma, pos_weight, neg_weight):
    conf = jnp.clip(pred.astype(jnp.float32), 1e-6, 1.0 - 1e-6)
    pos = jnp.logical_and(target.astype(jnp.float32) == 1.0, mask)
    loss = -alpha * jnp.power(1.0 - conf, gamma) * jnp.log(conf)
    loss = jnp.where(pos, loss, 0.0)
    return pos_weight * jnp.sum(loss) / jnp.sum(pos.astype(jnp.float32))


if __name__ == "__main__":
    key = jax.random.PRNGKey(0)
    N, L, S = 2, 8, 16
    k1, k2, k3 = jax.random.split(key, 3)

    pred = jax.random.uniform(k1, (N, L, S), dtype=jnp.float32,
                              minval=0.01, maxval=0.99)
    # binary ground-truth confidences (ensure some positives)
    target = (jax.random.uniform(k2, (N, L, S)) > 0.5).astype(jnp.float32)
    mask = jax.random.uniform(k3, (N, L, S)) > 0.2  # bool, valid==True

    alpha, gamma, pos_weight, neg_weight = 0.25, 2.0, 1.0, 1.0

    out = id_loss(pred, target, mask, alpha, gamma, pos_weight, neg_weight)
    out = jax.block_until_ready(out)

    ref = _reference(pred, target, mask, alpha, gamma, pos_weight, neg_weight)
    assert jnp.allclose(out, ref, rtol=1e-5, atol=1e-6), (out, ref)

    print("KERNEL_OK")
</pallas_src>

<mosaic_0001>
module attributes {stable_mosaic.version = 11 : i64} {
  func.func @kernel(%arg0: i32, %arg1: i32, %arg2: memref<8x512xf32, #tpu.memory_space<vmem>>, %arg3: memref<8x512xf32, #tpu.memory_space<vmem>>, %arg4: memref<8x512xi8, #tpu.memory_space<vmem>>, %arg5: memref<8x512xf32, #tpu.memory_space<vmem>>, %arg6: memref<8x512xf32, #tpu.memory_space<vmem>>) attributes {dimension_semantics = [#tpu.dimension_semantics<parallel>, #tpu.dimension_semantics<arbitrary>], iteration_bounds = array<i64: 2, 1>, scalar_prefetch = 0 : i64, scratch_operands = 0 : i64, tpu.core_type = #tpu.core_type<tc>, window_params = [{transform_indices = @transform_0, window_bounds = array<i64: 8, 512>}, {transform_indices = @transform_1, window_bounds = array<i64: 8, 512>}, {transform_indices = @transform_2, window_bounds = array<i64: 8, 512>}, {transform_indices = @transform_3, window_bounds = array<i64: 8, 512>}, {transform_indices = @transform_4, window_bounds = array<i64: 8, 512>}]} {
    %c0_i32 = arith.constant 0 : i32
    %0 = arith.cmpi eq, %arg1, %c0_i32 : i32
    %1 = arith.extui %0 : i1 to i32
    %c0_i32_0 = arith.constant 0 : i32
    %2 = arith.cmpi ne, %1, %c0_i32_0 : i32
    scf.if %2 {
      %cst_19 = arith.constant 0.000000e+00 : f32
      %32 = vector.broadcast %cst_19 : f32 to vector<8x512xf32>
      %c0_20 = arith.constant 0 : index
      %c0_21 = arith.constant 0 : index
      %33 = vector.load %arg5[%c0_20, %c0_21] : memref<8x512xf32, #tpu.memory_space<vmem>>, vector<8x512xf32>
      tpu.vector_store %arg5[%c0_20, %c0_21], %32 {strides = array<i32>} : memref<8x512xf32, #tpu.memory_space<vmem>>, vector<8x512xf32>,
      %cst_22 = arith.constant 0.000000e+00 : f32
      %34 = vector.broadcast %cst_22 : f32 to vector<8x512xf32>
      %c0_23 = arith.constant 0 : index
      %c0_24 = arith.constant 0 : index
      %35 = vector.load %arg6[%c0_23, %c0_24] : memref<8x512xf32, #tpu.memory_space<vmem>>, vector<8x512xf32>
      tpu.vector_store %arg6[%c0_23, %c0_24], %34 {strides = array<i32>} : memref<8x512xf32, #tpu.memory_space<vmem>>, vector<8x512xf32>,
    } else {
    }
    %c0 = arith.constant 0 : index
    %c0_1 = arith.constant 0 : index
    %3 = vector.load %arg2[%c0, %c0_1] : memref<8x512xf32, #tpu.memory_space<vmem>>, vector<8x512xf32>
    %cst = arith.constant 9.99999997E-7 : f32
    %cst_2 = arith.constant 0.999998986 : f32
    %4 = vector.broadcast %cst : f32 to vector<8x512xf32>
    %5 = arith.maximumf %4, %3 : vector<8x512xf32>
    %6 = vector.broadcast %cst_2 : f32 to vector<8x512xf32>
    %7 = arith.minimumf %6, %5 : vector<8x512xf32>
    %c0_3 = arith.constant 0 : index
    %c0_4 = arith.constant 0 : index
    %8 = vector.load %arg3[%c0_3, %c0_4] : memref<8x512xf32, #tpu.memory_space<vmem>>, vector<8x512xf32>
    %cst_5 = arith.constant 1.000000e+00 : f32
    %9 = vector.broadcast %cst_5 : f32 to vector<8x512xf32>
    %10 = arith.cmpf oeq, %8, %9 : vector<8x512xf32>
    %c0_6 = arith.constant 0 : index
    %c0_7 = arith.constant 0 : index
    %11 = vector.load %arg4[%c0_6, %c0_7] : memref<8x512xi8, #tpu.memory_space<vmem>>, vector<8x512xi8>
    %c0_i8 = arith.constant 0 : i8
    %12 = vector.broadcast %c0_i8 : i8 to vector<8x512xi8>
    %13 = arith.cmpi ne, %11, %12 : vector<8x512xi8>
    %14 = arith.andi %10, %13 : vector<8x512xi1>
    %cst_8 = arith.constant 1.000000e+00 : f32
    %15 = vector.broadcast %cst_8 : f32 to vector<8x512xf32>
    %16 = arith.subf %15, %7 : vector<8x512xf32>
    %17 = arith.mulf %16, %16 : vector<8x512xf32>
    %cst_9 = arith.constant -2.500000e-01 : f32
    %18 = vector.broadcast %cst_9 : f32 to vector<8x512xf32>
    %19 = arith.mulf %18, %17 : vector<8x512xf32>
    %20 = math.log %7 : vector<8x512xf32>
    %21 = arith.mulf %19, %20 : vector<8x512xf32>
    %c0_10 = arith.constant 0 : index
    %c0_11 = arith.constant 0 : index
    %22 = vector.load %arg5[%c0_10, %c0_11] : memref<8x512xf32, #tpu.memory_space<vmem>>, vector<8x512xf32>
    %cst_12 = arith.constant 0.000000e+00 : f32
    %23 = vector.broadcast %cst_12 : f32 to vector<8x512xf32>
    %24 = arith.select %14, %21, %23 : vector<8x512xi1>, vector<8x512xf32>
    %25 = arith.addf %22, %24 : vector<8x512xf32>
    %c0_13 = arith.constant 0 : index
    %c0_14 = arith.constant 0 : index
    %26 = vector.load %arg5[%c0_13, %c0_14] : memref<8x512xf32, #tpu.memory_space<vmem>>, vector<8x512xf32>
    tpu.vector_store %arg5[%c0_13, %c0_14], %25 {strides = array<i32>} : memref<8x512xf32, #tpu.memory_space<vmem>>, vector<8x512xf32>,
    %c0_15 = arith.constant 0 : index
    %c0_16 = arith.constant 0 : index
    %27 = vector.load %arg6[%c0_15, %c0_16] : memref<8x512xf32, #tpu.memory_space<vmem>>, vector<8x512xf32>
    %28 = arith.extui %14 : vector<8x512xi1> to vector<8x512xi32>
    %29 = arith.sitofp %28 : vector<8x512xi32> to vector<8x512xf32>
    %30 = arith.addf %27, %29 : vector<8x512xf32>
    %c0_17 = arith.constant 0 : index
    %c0_18 = arith.constant 0 : index
    %31 = vector.load %arg6[%c0_17, %c0_18] : memref<8x512xf32, #tpu.memory_space<vmem>>, vector<8x512xf32>
    tpu.vector_store %arg6[%c0_17, %c0_18], %30 {strides = array<i32>} : memref<8x512xf32, #tpu.memory_space<vmem>>, vector<8x512xf32>,
    return
  }
  func.func @transform_0(%arg0: i32, %arg1: i32) -> (i32, i32) {
    %c1_i32 = arith.constant 1 : i32
    %0 = arith.muli %arg0, %c1_i32 : i32
    %1 = arith.addi %0, %arg1 : i32
    %c0_i32 = arith.constant 0 : i32
    %c0_i32_0 = arith.constant 0 : i32
    return %1, %c0_i32 : i32, i32
  }
  func.func @transform_1(%arg0: i32, %arg1: i32) -> (i32, i32) {
    %c1_i32 = arith.constant 1 : i32
    %0 = arith.muli %arg0, %c1_i32 : i32
    %1 = arith.addi %0, %arg1 : i32
    %c0_i32 = arith.constant 0 : i32
    %c0_i32_0 = arith.constant 0 : i32
    return %1, %c0_i32 : i32, i32
  }
  func.func @transform_2(%arg0: i32, %arg1: i32) -> (i32, i32) {
    %c1_i32 = arith.constant 1 : i32
    %0 = arith.muli %arg0, %c1_i32 : i32
    %1 = arith.addi %0, %arg1 : i32
    %c0_i32 = arith.constant 0 : i32
    %c0_i32_0 = arith.constant 0 : i32
    return %1, %c0_i32 : i32, i32
  }
  func.func @transform_3(%arg0: i32, %arg1: i32) -> (i32, i32) {
    %c0_i32 = arith.constant 0 : i32
    %c0_i32_0 = arith.constant 0 : i32
    return %arg0, %c0_i32 : i32, i32
  }
  func.func @transform_4(%arg0: i32, %arg1: i32) -> (i32, i32) {
    %c0_i32 = arith.constant 0 : i32
    %c0_i32_0 = arith.constant 0 : i32
    return %arg0, %c0_i32 : i32, i32
  }
}

</mosaic_0001>

<llo_original>
// kernel: tpu_custom_call.1
$region0: #{tpu_custom_call.1}
  #allocation0 [shape = 'u32[]', space=smem, size = 0x4, offset = 0x4, fixed_abs, tag = 'smem constant byte address 0x4 - core index']
  #allocation1 [shape = 'u32[144,128]{1,0:T(1,128)}', space=vmem, size = 0x12000, scoped, tag = 'internal scratch']
  %s0 = inlined_call_operand.hbm [shape: f32[16,512], index: 0, kind: input, shape index: {}]
  %s1 = inlined_call_operand.hbm [shape: f32[16,512], index: 1, kind: input, shape index: {}]
  %s2 = inlined_call_operand.hbm [shape: s8[16,512], index: 2, kind: input, shape index: {}]
  %s3 = inlined_call_operand.hbm [shape: f32[16,512], index: 3, kind: output, shape index: {0}]
  %s4 = inlined_call_operand.hbm [shape: f32[16,512], index: 4, kind: output, shape index: {1}]
  %5 = xla_tuple %s3, %s4
  %s6 = sld [smem:[#allocation0]]
  $region69: #{tpu_custom_call.1} parent=0
    _
  %s8 = ssub.s32 1, %s6
  %s9 = scalar_select 0, %s8, %s6
  $region1: #{tpu_custom_call.1} parent=0
    #allocation2 [shape = 'u8[32768]{0}', space=vmem, size = 0x8000, scoped, tag = 'input window, operand 0']
    #allocation3 [shape = 's32[2]{0}', space=sflag, size = 0x8, scoped, tag = 'scoped memory for tpu_custom_call.1']
    #allocation4 [shape = 's32[2]{0}', space=sflag, size = 0x8, scoped, tag = 'scoped memory for tpu_custom_call.1']
    #allocation5 [shape = 'u8[32768]{0}', space=vmem, size = 0x8000, scoped, tag = 'input window, operand 1']
    #allocation6 [shape = 's32[2]{0}', space=sflag, size = 0x8, scoped, tag = 'scoped memory for tpu_custom_call.1']
    #allocation7 [shape = 'u8[8192]{0}', space=vmem, size = 0x2000, scoped, tag = 'input window, operand 2']
    #allocation8 [shape = 'u8[32768]{0}', space=vmem, size = 0x8000, scoped, tag = 'output window, operand 0']
    #allocation9 [shape = 'u8[32768]{0}', space=vmem, size = 0x8000, scoped, tag = 'output window, operand 1']
    #allocation10 [shape = 's32[2]{0}', space=sflag, size = 0x8, scoped, tag = 'scoped memory for tpu_custom_call.1']
    %10 = vsyncpa [#allocation3], 0
    %s11 = scalar_lea.sflag [#allocation3], 1
    %12 = vsyncpa %s11, 0
    %13 = vsyncpa [#allocation6], 0
    %s14 = scalar_lea.sflag [#allocation6], 1
    %15 = vsyncpa %s14, 0
    %16 = vsyncpa [#allocation4], 0
    %s17 = scalar_lea.sflag [#allocation4], 1
    %18 = vsyncpa %s17, 0
    %19 = vsyncpa [#allocation10], 0
    %s20 = scalar_lea.sflag [#allocation10], 1
    %21 = vsyncpa %s20, 0
    loop: start=0, step=1, limit=4
    $region2: #{tpu_custom_call.1} parent=1 // loop_pre_header
      _
    $region3: #{tpu_custom_call.1} parent=1 // loop_header
      %s23 = sphi 0, %s27
      %p24 = scmp.ge.s32.totalorder %s23, 4
      %s30 = sphi 0, %s42
      %s31 = sphi 0, %s38
      %s32 = sphi 0, %s30
      %s33 = sphi 0, %s31
      %s34 = sphi 0, %s32
      %s35 = sphi 0, %s33
      %s47 = sphi 0, %s49
      %s50 = sphi 0, %s47
      %s51 = sphi 0, %s50
      %s67 = sphi 0, %s51
      %s75 = sphi 0, %s77
      %s78 = sphi 0, %s75
      %s79 = sphi 0, %s78
      %s95 = sphi 0, %s79
      %s103 = sphi 0, %s105
      %s106 = sphi 0, %s103
      %s107 = sphi 0, %s106
      %s123 = sphi 0, %s107
      %s129 = sphi 0, %s131
      %s132 = sphi 0, %s129
      %s133 = sphi 0, %s132
      %s149 = sphi 0, %s133
      %s155 = sphi 0, %s157
      %s158 = sphi 0, %s155
      %s159 = sphi 0, %s158
      %s175 = sphi 0, %s159
    $region4: #{tpu_custom_call.1} parent=1 // loop_header_branch
      %26 = sbr.rel (%p24) target = $region8
    $region5: #{tpu_custom_call.1} parent=1 // loop_body
      %s28 = ssub.s32 %s23, 1
      %s29 = ssub.s32 %s23, 2
      %s36 = sadd.s32 1, %s31
      %p37 = scmp.ge.s32.totalorder %s36, 1
      %s38 = scalar_select %p37, 0, %s36
      %s39 = sadd.s32 1, %s30
      %s40 = scalar_select %p37, %s39, %s30
      %p41 = scmp.ge.s32.totalorder %s40, 2
      %s42 = scalar_select %p41, 0, %s40
      %s43 = sadd.s32 %s30, %s31
      %s44 = sadd.s32 %s42, %s38
      %s45 = ssub.s32 %s43, %s44
      %p46 = scmp.eq.s32.totalorder %s45, 0
      %s48 = sadd.s32 %s47, 1
      %s49 = scalar_select %p46, %s47, %s48
      %p52 = pneg %p46
      %p53 = scmp.eq.s32.totalorder %s23, 1
      %p54 = por %p52, %p53
      %p55 = scmp.ne.s32.totalorder %s47, %s50
      %p56 = scmp.eq.s32.totalorder %s23, 0
      %p57 = por %p55, %p56
      %p58 = scmp.ne.s32.totalorder %s47, %s50
      %p59 = scmp.eq.s32.totalorder %s28, 1
      %p60 = por %p58, %p59
      %p61 = scmp.ne.s32.totalorder %s50, %s51
      %p62 = scmp.eq.s32.totalorder %s28, 0
      %p63 = por %p61, %p62
      %p64 = scmp.ne.s32.totalorder %s50, %s51
      %p65 = scmp.eq.s32.totalorder %s29, 1
      %p66 = por %p64, %p65
      %p68 = scmp.ne.s32.totalorder %s51, %s67
      %p69 = scmp.eq.s32.totalorder %s29, 0
      %p70 = por %p68, %p69
      %s71 = sadd.s32 %s30, %s31
      %s72 = sadd.s32 %s42, %s38
      %s73 = ssub.s32 %s71, %s72
      %p74 = scmp.eq.s32.totalorder %s73, 0
      %s76 = sadd.s32 %s75, 1
      %s77 = scalar_select %p74, %s75, %s76
      %p80 = pneg %p74
      %p81 = scmp.eq.s32.totalorder %s23, 1
      %p82 = por %p80, %p81
      %p83 = scmp.ne.s32.totalorder %s75, %s78
      %p84 = scmp.eq.s32.totalorder %s23, 0
      %p85 = por %p83, %p84
      %p86 = scmp.ne.s32.totalorder %s75, %s78
      %p87 = scmp.eq.s32.totalorder %s28, 1
      %p88 = por %p86, %p87
      %p89 = scmp.ne.s32.totalorder %s78, %s79
      %p90 = scmp.eq.s32.totalorder %s28, 0
      %p91 = por %p89, %p90
      %p92 = scmp.ne.s32.totalorder %s78, %s79
      %p93 = scmp.eq.s32.totalorder %s29, 1
      %p94 = por %p92, %p93
      %p96 = scmp.ne.s32.totalorder %s79, %s95
      %p97 = scmp.eq.s32.totalorder %s29, 0
      %p98 = por %p96, %p97
      %s99 = sadd.s32 %s30, %s31
      %s100 = sadd.s32 %s42, %s38
      %s101 = ssub.s32 %s99, %s100
      %p102 = scmp.eq.s32.totalorder %s101, 0
      %s104 = sadd.s32 %s103, 1
      %s105 = scalar_select %p102, %s103, %s104
      %p108 = pneg %p102
      %p109 = scmp.eq.s32.totalorder %s23, 1
      %p110 = por %p108, %p109
      %p111 = scmp.ne.s32.totalorder %s103, %s106
      %p112 = scmp.eq.s32.totalorder %s23, 0
      %p113 = por %p111, %p112
      %p114 = scmp.ne.s32.totalorder %s103, %s106
      %p115 = scmp.eq.s32.totalorder %s28, 1
      %p116 = por %p114, %p115
      %p117 = scmp.ne.s32.totalorder %s106, %s107
      %p118 = scmp.eq.s32.totalorder %s28, 0
      %p119 = por %p117, %p118
      %p120 = scmp.ne.s32.totalorder %s106, %s107
      %p121 = scmp.eq.s32.totalorder %s29, 1
      %p122 = por %p120, %p121
      %p124 = scmp.ne.s32.totalorder %s107, %s123
      %p125 = scmp.eq.s32.totalorder %s29, 0
      %p126 = por %p124, %p125
      %s127 = ssub.s32 %s30, %s42
      %p128 = scmp.eq.s32.totalorder %s127, 0
      %s130 = sadd.s32 %s129, 1
      %s131 = scalar_select %p128, %s129, %s130
      %p134 = pneg %p128
      %p135 = scmp.eq.s32.totalorder %s23, 1
      %p136 = por %p134, %p135
      %p137 = scmp.ne.s32.totalorder %s129, %s132
      %p138 = scmp.eq.s32.totalorder %s23, 0
      %p139 = por %p137, %p138
      %p140 = scmp.ne.s32.totalorder %s129, %s132
      %p141 = scmp.eq.s32.totalorder %s28, 1
      %p142 = por %p140, %p141
      %p143 = scmp.ne.s32.totalorder %s132, %s133
      %p144 = scmp.eq.s32.totalorder %s28, 0
      %p145 = por %p143, %p144
      %p146 = scmp.ne.s32.totalorder %s132, %s133
      %p147 = scmp.eq.s32.totalorder %s29, 1
      %p148 = por %p146, %p147
      %p150 = scmp.ne.s32.totalorder %s133, %s149
      %p151 = scmp.eq.s32.totalorder %s29, 0
      %p152 = por %p150, %p151
      %s153 = ssub.s32 %s30, %s42
      %p154 = scmp.eq.s32.totalorder %s153, 0
      %s156 = sadd.s32 %s155, 1
      %s157 = scalar_select %p154, %s155, %s156
      %p160 = pneg %p154
      %p161 = scmp.eq.s32.totalorder %s23, 1
      %p162 = por %p160, %p161
      %p163 = scmp.ne.s32.totalorder %s155, %s158
      %p164 = scmp.eq.s32.totalorder %s23, 0
      %p165 = por %p163, %p164
      %p166 = scmp.ne.s32.totalorder %s155, %s158
      %p167 = scmp.eq.s32.totalorder %s28, 1
      %p168 = por %p166, %p167
      %p169 = scmp.ne.s32.totalorder %s158, %s159
      %p170 = scmp.eq.s32.totalorder %s28, 0
      %p171 = por %p169, %p170
      %p172 = scmp.ne.s32.totalorder %s158, %s159
      %p173 = scmp.eq.s32.totalorder %s29, 1
      %p174 = por %p172, %p173
      %p176 = scmp.ne.s32.totalorder %s159, %s175
      %p177 = scmp.eq.s32.totalorder %s29, 0
      %p178 = por %p176, %p177
      %p179 = scmp.le.s32.totalorder 1, %s23
      %p180 = scmp.lt.s32.totalorder %s23, 3
      %p181 = pnand %p179, %p180
      %p182 = pneg %p181
      // Predicated region
      $region9: #{tpu_custom_call.1} parent=5 // pred_check
        _
      $region10: #{tpu_custom_call.1} parent=5 // pred_check_branch
        %184 = sbr.rel (%p181) target = $region12
      $region11: #{tpu_custom_call.1} parent=5 // pred_region
        %s185 = ssub.s32 %s23, 1
      $region12: #{tpu_custom_call.1} parent=5 // pred_fallthru
        _
      %p186 = scmp.lt.s32.totalorder %s23, 2
      // Predicated region
      $region13: #{tpu_custom_call.1} parent=5 // pred_check
        %p187 = pneg %p186
      $region14: #{tpu_custom_call.1} parent=5 // pred_check_branch
        %189 = sbr.rel (%p187) target = $region16
      $region15: #{tpu_custom_call.1} parent=5 // pred_region
        // Predicated region
        $region17: #{tpu_custom_call.1} parent=15 // pred_check
          %p190 = pneg %p57
        $region18: #{tpu_custom_call.1} parent=15 // pred_check_branch
          %192 = sbr.rel (%p190) target = $region20
        $region19: #{tpu_custom_call.1} parent=15 // pred_region
          %s193 = sand.u32 %s47, 1
          %s194 = scalar_lea.sflag [#allocation3], %s193
          %s195 = sand.u32 %s47, 1
          %s196 = smul.addr %s195, 32
          %s197 = scalar_lea.vmem [#allocation2], %s196
          %s198 = sadd.s32 %s30, %s31
          %s200 = ssub.s32 512, 512
          %201 = vsyncadd %s194, %s200
          %s202 = smul.addr %s198, 4
          %s203 = smul.addr %s202, 128
          %s204 = scalar_lea.hbm %s0, %s203
          %s206 = sshll.u32 %s197, 4
          %s207 = int_to_ptr.vmem [resolvable:$true] %s206
          %209 = dma.hbm_to_vmem [thread:$0]  %s204, 512, %s207, %s194
        $region20: #{tpu_custom_call.1} parent=15 // pred_fallthru
          _
        // Predicated region
        $region21: #{tpu_custom_call.1} parent=15 // pred_check
          %p210 = pneg %p85
        $region22: #{tpu_custom_call.1} parent=15 // pred_check_branch
          %212 = sbr.rel (%p210) target = $region24
        $region23: #{tpu_custom_call.1} parent=15 // pred_region
          %s213 = sand.u32 %s23, 1
          %s214 = scalar_lea.sflag [#allocation6], %s213
          %s215 = sand.u32 %s75, 1
          %s216 = smul.addr %s215, 32
          %s217 = scalar_lea.vmem [#allocation5], %s216
          %s218 = sadd.s32 %s30, %s31
          %s220 = ssub.s32 512, 512
          %221 = vsyncadd %s214, %s220
          %s222 = smul.addr %s218, 4
          %s223 = smul.addr %s222, 128
          %s224 = scalar_lea.hbm %s1, %s223
          %s226 = sshll.u32 %s217, 4
          %s227 = int_to_ptr.vmem [resolvable:$true] %s226
          %229 = dma.hbm_to_vmem [thread:$0]  %s224, 512, %s227, %s214
        $region24: #{tpu_custom_call.1} parent=15 // pred_fallthru
          _
        // Predicated region
        $region25: #{tpu_custom_call.1} parent=15 // pred_check
          %p230 = pneg %p113
        $region26: #{tpu_custom_call.1} parent=15 // pred_check_branch
          %232 = sbr.rel (%p230) target = $region28
        $region27: #{tpu_custom_call.1} parent=15 // pred_region
          %s233 = sand.u32 %s23, 1
          %s234 = scalar_lea.sflag [#allocation6], %s233
          %s235 = sand.u32 %s103, 1
          %s236 = smul.addr %s235, 8
          %s237 = scalar_lea.vmem [#allocation7], %s236
          %s238 = sadd.s32 %s30, %s31
          %s240 = ssub.s32 128, 128
          %241 = vsyncadd %s234, %s240
          %s242 = smul.addr %s238, 4
          %s243 = smul.addr %s242, 32
          %s244 = scalar_lea.hbm %s2, %s243
          %s246 = sshll.u32 %s237, 4
          %s247 = int_to_ptr.vmem [resolvable:$true] %s246
          %249 = dma.hbm_to_vmem [thread:$0]  %s244, 128, %s247, %s234
        $region28: #{tpu_custom_call.1} parent=15 // pred_fallthru
          _
      $region16: #{tpu_custom_call.1} parent=5 // pred_fallthru
        _
      %p250 = scmp.le.s32.totalorder 1, %s23
      %p251 = scmp.lt.s32.totalorder %s23, 3
      %p252 = pnand %p250, %p251
      %p253 = pneg %p252
      // Predicated region
      $region29: #{tpu_custom_call.1} parent=5 // pred_check
        _
      $region30: #{tpu_custom_call.1} parent=5 // pred_check_branch
        %255 = sbr.rel (%p252) target = $region32
      $region31: #{tpu_custom_call.1} parent=5 // pred_region
        %s256 = ssub.s32 %s23, 1
        %s257 = sand.u32 %s50, 1
        %s258 = scalar_lea.sflag [#allocation3], %s257
        %s259 = sand.u32 %s50, 1
        %s260 = smul.addr %s259, 32
        %s261 = scalar_lea.vmem [#allocation2], %s260
        // Predicated region
        $region33: #{tpu_custom_call.1} parent=31 // pred_check
          %p262 = pneg %p63
        $region34: #{tpu_custom_call.1} parent=31 // pred_check_branch
          %264 = sbr.rel (%p262) target = $region36
        $region35: #{tpu_custom_call.1} parent=31 // pred_region
          %265 = dma.done %s258, 512
        $region36: #{tpu_custom_call.1} parent=31 // pred_fallthru
          _
        %s266 = sand.u32 %s28, 1
        %s267 = scalar_lea.sflag [#allocation6], %s266
        %s268 = sand.u32 %s78, 1
        %s269 = smul.addr %s268, 32
        %s270 = scalar_lea.vmem [#allocation5], %s269
        // Predicated region
        $region37: #{tpu_custom_call.1} parent=31 // pred_check
          %p271 = pneg %p91
        $region38: #{tpu_custom_call.1} parent=31 // pred_check_branch
          %273 = sbr.rel (%p271) target = $region40
        $region39: #{tpu_custom_call.1} parent=31 // pred_region
          %274 = dma.done %s267, 512
        $region40: #{tpu_custom_call.1} parent=31 // pred_fallthru
          _
        %s275 = sand.u32 %s28, 1
        %s276 = scalar_lea.sflag [#allocation6], %s275
        %s277 = sand.u32 %s106, 1
        %s278 = smul.addr %s277, 8
        %s279 = scalar_lea.vmem [#allocation7], %s278
        // Predicated region
        $region41: #{tpu_custom_call.1} parent=31 // pred_check
          %p280 = pneg %p119
        $region42: #{tpu_custom_call.1} parent=31 // pred_check_branch
          %282 = sbr.rel (%p280) target = $region44
        $region43: #{tpu_custom_call.1} parent=31 // pred_region
          %283 = dma.done %s276, 128
        $region44: #{tpu_custom_call.1} parent=31 // pred_fallthru
          _
        %s284 = sand.u32 %s50, 1
        %s285 = scalar_lea.sflag [#allocation3], %s284
        %s286 = sand.u32 %s50, 1
        %s287 = smul.addr %s286, 32
        %s288 = scalar_lea.vmem [#allocation2], %s287
        %p289 = pneg %p63
        %p290 = pneg %p60
        %s291 = sand.u32 %s28, 1
        %s292 = scalar_lea.sflag [#allocation6], %s291
        %s293 = sand.u32 %s78, 1
        %s294 = smul.addr %s293, 32
        %s295 = scalar_lea.vmem [#allocation5], %s294
        %p296 = pneg %p91
        %p297 = pneg %p88
        %s298 = sand.u32 %s28, 1
        %s299 = scalar_lea.sflag [#allocation6], %s298
        %s300 = sand.u32 %s106, 1
        %s301 = smul.addr %s300, 8
        %s302 = scalar_lea.vmem [#allocation7], %s301
        %p303 = pneg %p119
        %p304 = pneg %p116
        %p305 = pneg %p145
        %p306 = pneg %p142
        %s307 = sand.u32 %s132, 1
        %s308 = scalar_lea.sflag [#allocation4], %s307
        %s309 = sand.u32 %s132, 1
        %s310 = smul.addr %s309, 32
        %s311 = scalar_lea.vmem [#allocation8], %s310
        %p312 = pneg %p171
        %p313 = pneg %p168
        %s314 = sand.u32 %s158, 1
        %s315 = scalar_lea.sflag [#allocation10], %s314
        %s316 = sand.u32 %s158, 1
        %s317 = smul.addr %s316, 32
        %s318 = scalar_lea.vmem [#allocation9], %s317
        %s319 = sadd.s32 %s32, %s33
        %s320 = sadd.s32 %s32, %s33
        %s321 = sadd.s32 %s32, %s33
        %p324 = scmp.eq.s32.totalorder %s33, 0
        // Predicated region
        $region45: #{tpu_custom_call.1} parent=31 // pred_check
          %p325 = pneg %p324
        $region46: #{tpu_custom_call.1} parent=31 // pred_check_branch
          %327 = sbr.rel (%p325) target = $region48
        $region47: #{tpu_custom_call.1} parent=31 // pred_region
          %328 = vst [vmem:[%s311] sm:$0xff] 0.0
          %329 = vst [vmem:[%s311 + $0x8] sm:$0xff] 0.0
          %330 = vst [vmem:[%s311 + $0x10] sm:$0xff] 0.0
          %331 = vst [vmem:[%s311 + $0x18] sm:$0xff] 0.0
          %332 = vst [vmem:[%s318] sm:$0xff] 0.0
          %333 = vst [vmem:[%s318 + $0x8] sm:$0xff] 0.0
          %334 = vst [vmem:[%s318 + $0x10] sm:$0xff] 0.0
          %335 = vst [vmem:[%s318 + $0x18] sm:$0xff] 0.0
        $region48: #{tpu_custom_call.1} parent=31 // pred_fallthru
          _
        %v336 = vld [vmem:[%s261] sm:$0xff]
        %v337 = vld [vmem:[%s261 + $0x8] sm:$0xff]
        %v338 = vld [vmem:[%s261 + $0x10] sm:$0xff]
        %v339 = vld [vmem:[%s261 + $0x18] sm:$0xff]
        %v340 = vmax.f32 %v336, 1e-06
        %v341 = vmax.f32 %v337, 1e-06
        %v342 = vmax.f32 %v338, 1e-06
        %v343 = vmax.f32 %v339, 1e-06
        %v344 = vmin.f32 %v340, 0.999999
        %v345 = vmin.f32 %v341, 0.999999
        %v346 = vmin.f32 %v342, 0.999999
        %v347 = vmin.f32 %v343, 0.999999
        %v348 = vld [vmem:[%s270] sm:$0xff]
        %v349 = vld [vmem:[%s270 + $0x8] sm:$0xff]
        %v350 = vld [vmem:[%s270 + $0x10] sm:$0xff]
        %v351 = vld [vmem:[%s270 + $0x18] sm:$0xff]
        %vm352 = vcmp.eq.f32.partialorder %v348, 1.0
        %vm353 = vcmp.eq.f32.partialorder %v349, 1.0
        %vm354 = vcmp.eq.f32.partialorder %v350, 1.0
        %vm355 = vcmp.eq.f32.partialorder %v351, 1.0
        %v356 = vld [vmem:[%s279] sm:$0xff]
        %vm357 = vnez %v356
        %v358 = vsel %vm357, 16843009, 0
        %v359 = vunpack.c.0.s8 %v358
        %v360 = vunpack.c.1.s8 %v358
        %v361 = vunpack.c.2.s8 %v358
        %v362 = vunpack.c.3.s8 %v358
        %vm363 = vcmp.ne.s32.totalorder %v359, 0
        %vm364 = vcmp.ne.s32.totalorder %v360, 0
        %vm365 = vcmp.ne.s32.totalorder %v361, 0
        %vm366 = vcmp.ne.s32.totalorder %v362, 0
        %vm367 = vmand %vm352, %vm363
        %vm368 = vmand %vm353, %vm364
        %vm369 = vmand %vm354, %vm365
        %vm370 = vmand %vm355, %vm366
        %v371 = vsub.f32 1.0, %v344
        %v372 = vsub.f32 1.0, %v345
        %v373 = vsub.f32 1.0, %v346
        %v374 = vsub.f32 1.0, %v347
        %v375 = vmul.f32 %v371, %v371
        %v376 = vmul.f32 %v372, %v372
        %v377 = vmul.f32 %v373, %v373
        %v378 = vmul.f32 %v374, %v374
        %v379 = vmul.f32 %v375, -0.25
        %v380 = vmul.f32 %v376, -0.25
        %v381 = vmul.f32 %v377, -0.25
        %v382 = vmul.f32 %v378, -0.25
        %v383 = vlog2.pop %v344
        %v384 = vmul.f32 %v383, 0.6931472
        %v385 = vlog2.pop %v345
        %v386 = vmul.f32 %v385, 0.6931472
        %v387 = vlog2.pop %v346
        %v388 = vmul.f32 %v387, 0.6931472
        %v389 = vlog2.pop %v347
        %v390 = vmul.f32 %v389, 0.6931472
        %v391 = vmul.f32 %v379, %v384
        %v392 = vmul.f32 %v380, %v386
        %v393 = vmul.f32 %v381, %v388
        %v394 = vmul.f32 %v382, %v390
        %v395 = vld [vmem:[%s311] sm:$0xff]
        %v396 = vld [vmem:[%s311 + $0x8] sm:$0xff]
        %v397 = vld [vmem:[%s311 + $0x10] sm:$0xff]
        %v398 = vld [vmem:[%s311 + $0x18] sm:$0xff]
        %v399 = vsel %vm367, %v391, 0.0
        %v400 = vsel %vm368, %v392, 0.0
        %v401 = vsel %vm369, %v393, 0.0
        %v402 = vsel %vm370, %v394, 0.0
        %v403 = vadd.f32 %v395, %v399
        %v404 = vadd.f32 %v396, %v400
        %v405 = vadd.f32 %v397, %v401
        %v406 = vadd.f32 %v398, %v402
        %407 = vst [vmem:[%s311] sm:$0xff] %v403
        %408 = vst [vmem:[%s311 + $0x8] sm:$0xff] %v404
        %409 = vst [vmem:[%s311 + $0x10] sm:$0xff] %v405
        %410 = vst [vmem:[%s311 + $0x18] sm:$0xff] %v406
        %v411 = vld [vmem:[%s318] sm:$0xff]
        %v412 = vld [vmem:[%s318 + $0x8] sm:$0xff]
        %v413 = vld [vmem:[%s318 + $0x10] sm:$0xff]
        %v414 = vld [vmem:[%s318 + $0x18] sm:$0xff]
        %v415 = vsel %vm367, 1, 0
        %v416 = vsel %vm368, 1, 0
        %v417 = vsel %vm369, 1, 0
        %v418 = vsel %vm370, 1, 0
        %v419 = vcvt.s32.f32 %v415
        %v420 = vcvt.s32.f32 %v416
        %v421 = vcvt.s32.f32 %v417
        %v422 = vcvt.s32.f32 %v418
        %v423 = vadd.f32 %v411, %v419
        %v424 = vadd.f32 %v412, %v420
        %v425 = vadd.f32 %v413, %v421
        %v426 = vadd.f32 %v414, %v422
        %427 = vst [vmem:[%s318] sm:$0xff] %v423
        %428 = vst [vmem:[%s318 + $0x8] sm:$0xff] %v424
        %429 = vst [vmem:[%s318 + $0x10] sm:$0xff] %v425
        %430 = vst [vmem:[%s318 + $0x18] sm:$0xff] %v426
        %s431 = sand.u32 %s132, 1
        %s432 = scalar_lea.sflag [#allocation4], %s431
        %s433 = sand.u32 %s132, 1
        %s434 = smul.addr %s433, 32
        %s435 = scalar_lea.vmem [#allocation8], %s434
        %s436 = sand.u32 %s158, 1
        %s437 = scalar_lea.sflag [#allocation10], %s436
        %s438 = sand.u32 %s158, 1
        %s439 = smul.addr %s438, 32
        %s440 = scalar_lea.vmem [#allocation9], %s439
        // Predicated region
        $region49: #{tpu_custom_call.1} parent=31 // pred_check
          %p441 = pneg %p142
        $region50: #{tpu_custom_call.1} parent=31 // pred_check_branch
          %443 = sbr.rel (%p441) target = $region52
        $region51: #{tpu_custom_call.1} parent=31 // pred_region
          %s445 = ssub.s32 512, 512
          %446 = vsyncadd %s432, %s445
          %s447 = smul.addr %s32, 4
          %s448 = smul.addr %s447, 128
          %s449 = scalar_lea.hbm %s3, %s448
          %s451 = sshll.u32 %s435, 4
          %s452 = int_to_ptr.vmem [resolvable:$true] %s451
          %454 = dma.vmem_to_hbm [thread:$0]  %s452, 512, %s449, %s432
        $region52: #{tpu_custom_call.1} parent=31 // pred_fallthru
          _
        // Predicated region
        $region53: #{tpu_custom_call.1} parent=31 // pred_check
          %p455 = pneg %p168
        $region54: #{tpu_custom_call.1} parent=31 // pred_check_branch
          %457 = sbr.rel (%p455) target = $region56
        $region55: #{tpu_custom_call.1} parent=31 // pred_region
          %s459 = ssub.s32 512, 512
          %460 = vsyncadd %s437, %s459
          %s461 = smul.addr %s32, 4
          %s462 = smul.addr %s461, 128
          %s463 = scalar_lea.hbm %s4, %s462
          %s465 = sshll.u32 %s440, 4
          %s466 = int_to_ptr.vmem [resolvable:$true] %s465
          %468 = dma.vmem_to_hbm [thread:$0]  %s466, 512, %s463, %s437
        $region56: #{tpu_custom_call.1} parent=31 // pred_fallthru
          _
      $region32: #{tpu_custom_call.1} parent=5 // pred_fallthru
        _
      %p469 = scmp.le.s32.totalorder 2, %s23
      // Predicated region
      $region57: #{tpu_custom_call.1} parent=5 // pred_check
        %p470 = pneg %p469
      $region58: #{tpu_custom_call.1} parent=5 // pred_check_branch
        %472 = sbr.rel (%p470) target = $region60
      $region59: #{tpu_custom_call.1} parent=5 // pred_region
        %s473 = ssub.s32 %s23, 2
        // Predicated region
        $region61: #{tpu_custom_call.1} parent=59 // pred_check
          %p474 = pneg %p148
        $region62: #{tpu_custom_call.1} parent=59 // pred_check_branch
          %476 = sbr.rel (%p474) target = $region64
        $region63: #{tpu_custom_call.1} parent=59 // pred_region
          %s477 = sand.u32 %s133, 1
          %s478 = scalar_lea.sflag [#allocation4], %s477
          %s479 = sand.u32 %s133, 1
          %s480 = smul.addr %s479, 32
          %s481 = scalar_lea.vmem [#allocation8], %s480
          %482 = dma.done %s478, 512
        $region64: #{tpu_custom_call.1} parent=59 // pred_fallthru
          _
        // Predicated region
        $region65: #{tpu_custom_call.1} parent=59 // pred_check
          %p483 = pneg %p174
        $region66: #{tpu_custom_call.1} parent=59 // pred_check_branch
          %485 = sbr.rel (%p483) target = $region68
        $region67: #{tpu_custom_call.1} parent=59 // pred_region
          %s486 = sand.u32 %s159, 1
          %s487 = scalar_lea.sflag [#allocation10], %s486
          %s488 = sand.u32 %s159, 1
          %s489 = smul.addr %s488, 32
          %s490 = scalar_lea.vmem [#allocation9], %s489
          %491 = dma.done %s487, 512
        $region68: #{tpu_custom_call.1} parent=59 // pred_fallthru
          _
      $region60: #{tpu_custom_call.1} parent=5 // pred_fallthru
        _
    $region6: #{tpu_custom_call.1} parent=1 // loop_footer
      %s27 = sadd.s32 1, %s23
    $region7: #{tpu_custom_call.1} parent=1 // loop_footer_branch
      %22 = sbr.rel target = $region3
    $region8: #{tpu_custom_call.1} parent=1 // loop_exit
      _
    %492 = vsyncpa [#allocation3], 1
    %s493 = scalar_lea.sflag [#allocation3], 1
    %494 = vsyncpa %s493, 1
    %495 = vsyncpa [#allocation6], 1
    %s496 = scalar_lea.sflag [#allocation6], 1
    %497 = vsyncpa %s496, 1
    %498 = vsyncpa [#allocation4], 1
    %s499 = scalar_lea.sflag [#allocation4], 1
    %500 = vsyncpa %s499, 1
    %501 = vsyncpa [#allocation10], 1
    %s502 = scalar_lea.sflag [#allocation10], 1
    %503 = vsyncpa %s502, 1

</llo_original>
